<compile_context>
chip_gen: v7x
topology: tpu7x:2x2x1
jax: 0.10.0
libtpu: 0.0.40
codegen_flags: <defaults>
</compile_context>

<pallas_src>
import functools

import jax
import jax.numpy as jnp
import numpy as np
from jax.experimental import pallas as pl
from jax.experimental.pallas import tpu as pltpu


def _round_up(x, m):
    return (x + m - 1) // m * m


def _gat_kernel(f1_ref, adj_ref, h_ref, f2t_ref, o_ref,
                acc_ref, den_ref, m_ref, *,
                n_heads, c_out_h, half_inv_temp, use_row_max):
    # f1_ref:  (TQ, H)      query-side attention scalars (precomputed)
    # adj_ref: (TQ, TK)     adjacency tile (bf16/f32; 0 => no edge)
    # h_ref:   (TK, H*c)    projected node features, key tile (concat-head layout)
    # f2t_ref: (H, TK)      key-side attention scalars, transposed (precomputed)
    # o_ref:   (TQ, H*c)    output tile (torch.cat(dim=1) layout)
    # acc_ref: (TQ, H*c)    numerator accumulator (VMEM scratch)
    # den_ref: (TQ, H)      softmax denominator accumulator
    # m_ref:   (TQ, H)      running max (only used when use_row_max)
    k = pl.program_id(1)

    @pl.when(k == 0)
    def _():
        acc_ref[...] = jnp.zeros_like(acc_ref)
        den_ref[...] = jnp.zeros_like(den_ref)
        m_ref[...] = jnp.full_like(m_ref, -1e30)

    adj = adj_ref[...].astype(jnp.float32)          # (TQ, TK)
    # "to_sparse" semantics: edges with adj == 0 carry exactly zero logit and
    # are dropped.  (Differs from sigmoid(x)-0.5 != 0 only on a measure-zero
    # set of borderline |logits| < ~1e-7.)
    mask = adj != 0.0
    f1 = f1_ref[...]                                 # (TQ, H)
    f2t = f2t_ref[...]                               # (H, TK)
    h_k = h_ref[...]                                 # (TK, HC)

    for hh in range(n_heads):                        # static, unrolled at trace time
        lo = hh * c_out_h
        hi = lo + c_out_h
        logits = adj * (f1[:, hh:hh + 1] + f2t[hh:hh + 1, :])   # (TQ, TK)
        # sigmoid(x) - 0.5 == 0.5*tanh(x/2); fold the 1/temp scale in.
        arg = half_inv_temp * jnp.tanh(0.5 * logits)

        if use_row_max:
            # Online softmax with running max (only for tiny temperatures where
            # exp(0.5/temp) could overflow).
            m_prev = m_ref[:, hh:hh + 1]
            m_tile = jnp.max(jnp.where(mask, arg, -1e30), axis=1, keepdims=True)
            m_new = jnp.maximum(m_prev, m_tile)
            alpha = jnp.exp(m_prev - m_new)
            e = jnp.where(mask, jnp.exp(arg - m_new), 0.0)
            den_ref[:, hh:hh + 1] = (alpha * den_ref[:, hh:hh + 1]
                                     + jnp.sum(e, axis=1, keepdims=True))
            acc_ref[:, lo:hi] = (alpha * acc_ref[:, lo:hi]
                                 + jnp.dot(e, h_k[:, lo:hi],
                                           preferred_element_type=jnp.float32))
            m_ref[:, hh:hh + 1] = m_new
        else:
            # |arg| <= 0.5/temp so exp cannot overflow: pure running sum.
            e = jnp.where(mask, jnp.exp(arg), 0.0)
            den_ref[:, hh:hh + 1] += jnp.sum(e, axis=1, keepdims=True)
            acc_ref[:, lo:hi] += jnp.dot(e, h_k[:, lo:hi],
                                         preferred_element_type=jnp.float32)

    @pl.when(k == pl.num_programs(1) - 1)
    def _():
        for hh in range(n_heads):
            lo = hh * c_out_h
            hi = lo + c_out_h
            d = den_ref[:, hh:hh + 1]
            safe = jnp.where(d > 0.0, d, 1.0)
            # Exact normalization (denominator is tiny; approx recip not worth it).
            out = jnp.where(d > 0.0, acc_ref[:, lo:hi] / safe, 0.0)
            o_ref[:, lo:hi] = out.astype(o_ref.dtype)


def gat_multihead(node_feats, adj, W, b, v, *, temp=1.0, concat_heads=True,
                  tq=256, tk=512, adj_dtype=jnp.bfloat16):
    """Pallas implementation of GATMultiHead.forward([node_feats, adj]).

    W: (H, c_in, c_out_h)  per-head linear weight (already transposed)
    b: (H, 1, c_out_h)     per-head bias
    v: (H, 2, c_out_h)     per-head attention vectors (v0, v1)

    adj is streamed in `adj_dtype` (default bf16, exact for 0/1 adjacencies);
    pass adj_dtype=jnp.float32 for arbitrarily weighted graphs.
    """
    H, c_in, c_out_h = W.shape
    N = node_feats.shape[0]
    HC = H * c_out_h
    temp = float(temp)
    half_inv_temp = 0.5 / temp
    use_row_max = half_inv_temp > 80.0    # trace-time guard against exp overflow

    f32 = jnp.float32
    x = node_feats.astype(f32)
    W = W.astype(f32)
    b = b.astype(f32)
    v = v.astype(f32)

    # ---- hoisted node projection (plain XLA, once per call) ----------------
    Wc = jnp.transpose(W, (1, 0, 2)).reshape(c_in, HC)     # (C_in, HC)
    bc = jnp.transpose(b, (1, 0, 2)).reshape(1, HC)        # (1, HC)
    h = x @ Wc + bc                                         # (N, HC)
    h_heads = h.reshape(N, H, c_out_h)
    f1 = jnp.einsum('nhc,hc->nh', h_heads, v[:, 0, :])      # (N, H)
    f2t = jnp.einsum('nhc,hc->hn', h_heads, v[:, 1, :])     # (H, N)

    # ---- tiling / padding ---------------------------------------------------
    tq_eff = min(tq, _round_up(max(N, 8), 8))               # rows: multiple of 8
    n_q = _round_up(N, tq_eff)
    tk_eff = min(tk, _round_up(max(N, 128), 128))           # cols: multiple of 128
    n_k = _round_up(N, tk_eff)
    pad_q = n_q - N
    pad_k = n_k - N

    adj_p = adj.astype(adj_dtype)
    if pad_q or pad_k:
        adj_p = jnp.pad(adj_p, ((0, pad_q), (0, pad_k)))
    h_p = jnp.pad(h, ((0, pad_k), (0, 0))) if pad_k else h
    f1_p = jnp.pad(f1, ((0, pad_q), (0, 0))) if pad_q else f1
    f2t_p = jnp.pad(f2t, ((0, 0), (0, pad_k))) if pad_k else f2t

    grid = (n_q // tq_eff, n_k // tk_eff)

    # VMEM is bounded by the (tq, tk) tiles -- independent of N.
    adj_bytes = jnp.dtype(adj_dtype).itemsize
    est = (2 * tq_eff * tk_eff * adj_bytes        # adj tiles (double-buffered)
           + 2 * tk_eff * HC * 4                  # h key tiles
           + 2 * (tq_eff + tk_eff) * H * 4        # f1 / f2t tiles
           + 2 * tq_eff * HC * 4                  # output tile
           + tq_eff * (HC + 2 * H) * 4            # acc / den / m scratch
           + 6 * tq_eff * tk_eff * 4)             # elementwise intermediates
    vmem_limit = int(min(max(2 * est, 8 * 2 ** 20), 64 * 2 ** 20))

    kernel = functools.partial(
        _gat_kernel, n_heads=H, c_out_h=c_out_h,
        half_inv_temp=half_inv_temp, use_row_max=use_row_max)

    out = pl.pallas_call(
        kernel,
        out_shape=jax.ShapeDtypeStruct((n_q, HC), f32),
        grid_spec=pltpu.PrefetchScalarGridSpec(
            num_scalar_prefetch=0,
            grid=grid,
            in_specs=[
                pl.BlockSpec((tq_eff, H), lambda q, k: (q, 0)),        # f1 query tile
                pl.BlockSpec((tq_eff, tk_eff), lambda q, k: (q, k)),   # adj tile
                pl.BlockSpec((tk_eff, HC), lambda q, k: (k, 0)),       # h key tile
                pl.BlockSpec((H, tk_eff), lambda q, k: (0, k)),        # f2^T key tile
            ],
            out_specs=pl.BlockSpec((tq_eff, HC), lambda q, k: (q, 0)),
            scratch_shapes=[
                pltpu.VMEM((tq_eff, HC), jnp.float32),   # numerator accumulator
                pltpu.VMEM((tq_eff, H), jnp.float32),    # softmax denominator
                pltpu.VMEM((tq_eff, H), jnp.float32),    # running max (guard path)
            ],
        ),
        compiler_params=pltpu.CompilerParams(
            dimension_semantics=("parallel", "arbitrary"),
            vmem_limit_bytes=vmem_limit,
        ),
    )(f1_p, adj_p, h_p, f2t_p)

    out = out[:N]
    if concat_heads:
        return out                       # already in torch.cat(res, dim=1) layout
    return out.reshape(N, H, c_out_h).mean(axis=1)


def _reference(node_feats, adj, W, b, v, temp=1.0, concat_heads=True):
    """Pure-JAX reference replicating the PyTorch (dense-equivalent) semantics."""
    res = []
    H = W.shape[0]
    for i in range(H):
        h = node_feats @ W[i] + b[i]
        f1 = (h * v[i, 0]).sum(axis=1, keepdims=True)
        f2 = (h * v[i, 1]).sum(axis=1, keepdims=True)
        logits = adj * (f1 + f2.T)
        u = jax.nn.sigmoid(logits) - 0.5
        mask = u != 0.0
        scaled = u / temp
        masked = jnp.where(mask, scaled, -1e30)
        m = jnp.max(masked, axis=1, keepdims=True)
        e = jnp.where(mask, jnp.exp(scaled - m), 0.0)
        s = jnp.sum(e, axis=1, keepdims=True)
        p = jnp.where(s > 0.0, e / jnp.where(s > 0.0, s, 1.0), 0.0)
        res.append(p @ h)
    if concat_heads:
        return jnp.concatenate(res, axis=1)
    return jnp.mean(jnp.stack(res, axis=0), axis=0)


if __name__ == "__main__":
    RTOL, ATOL = 2e-3, 2e-4

    def run_case(N, c_in, c_out, n_heads, temp, concat, seed, **kw):
        c_h = c_out // n_heads if concat else c_out
        key = jax.random.PRNGKey(seed)
        kx, kadj, kw_, kv0, kv1 = jax.random.split(key, 5)
        x = jax.random.normal(kx, (N, c_in), dtype=jnp.float32)
        adj = (jax.random.uniform(kadj, (N, N)) < 0.3).astype(jnp.float32)
        adj = jnp.maximum(adj, jnp.eye(N, dtype=jnp.float32))
        lim_w = float(np.sqrt(6.0 / (c_in + c_h)))
        lim_v = float(np.sqrt(6.0 / (c_h + 1)))
        W = jax.random.uniform(kw_, (n_heads, c_in, c_h),
                               minval=-lim_w, maxval=lim_w, dtype=jnp.float32)
        b = jnp.zeros((n_heads, 1, c_h), dtype=jnp.float32)
        v0 = jax.random.uniform(kv0, (n_heads, 1, c_h),
                                minval=-lim_v, maxval=lim_v, dtype=jnp.float32)
        v1 = jax.random.uniform(kv1, (n_heads, 1, c_h),
                                minval=-lim_v, maxval=lim_v, dtype=jnp.float32)
        v = jnp.concatenate([v0, v1], axis=1)                 # (H, 2, c_h)
        out = jax.block_until_ready(
            gat_multihead(x, adj, W, b, v, temp=temp, concat_heads=concat, **kw))
        ref = _reference(x, adj, W, b, v, temp=temp, concat_heads=concat)
        np.testing.assert_allclose(np.asarray(out), np.asarray(ref),
                                   rtol=RTOL, atol=ATOL)
        return out

    # 1) small graph, concat heads, single tile
    o = run_case(N=16, c_in=8, c_out=16, n_heads=2, temp=1.0, concat=True, seed=0)
    assert o.shape == (16, 16)

    # 2) larger graph, multi-tile grid (query + key tiling, ragged padding)
    run_case(N=160, c_in=8, c_out=16, n_heads=2, temp=0.5, concat=True, seed=1,
             tq=64, tk=128)

    # 3) head averaging (concat_heads=False)
    run_case(N=16, c_in=8, c_out=8, n_heads=2, temp=1.0, concat=False, seed=2)

    # 4) pathologically small temperature -> exercises the row-max guard path
    run_case(N=16, c_in=8, c_out=16, n_heads=2, temp=0.004, concat=True, seed=3)

    print("KERNEL_OK")
</pallas_src>

<mosaic_0001>
module attributes {stable_mosaic.version = 11 : i64} {
  func.func @_gat_kernel(%arg0: i32, %arg1: i32, %arg2: memref<16x2xf32, #tpu.memory_space<vmem>>, %arg3: memref<16x128xbf16, #tpu.memory_space<vmem>>, %arg4: memref<128x16xf32, #tpu.memory_space<vmem>>, %arg5: memref<2x128xf32, #tpu.memory_space<vmem>>, %arg6: memref<16x16xf32, #tpu.memory_space<vmem>>, %arg7: memref<16x16xf32, #tpu.memory_space<vmem>>, %arg8: memref<16x2xf32, #tpu.memory_space<vmem>>, %arg9: memref<16x2xf32, #tpu.memory_space<vmem>>) attributes {dimension_semantics = [#tpu.dimension_semantics<parallel>, #tpu.dimension_semantics<arbitrary>], iteration_bounds = array<i64: 1, 1>, scalar_prefetch = 0 : i64, scratch_operands = 3 : i64, tpu.core_type = #tpu.core_type<tc>, window_params = [{transform_indices = @transform_0, window_bounds = array<i64: 16, 2>}, {transform_indices = @transform_1, window_bounds = array<i64: 16, 128>}, {transform_indices = @transform_2, window_bounds = array<i64: 128, 16>}, {transform_indices = @transform_3, window_bounds = array<i64: 2, 128>}, {transform_indices = @transform_4, window_bounds = array<i64: 16, 16>}]} {
    %c0_i32 = arith.constant 0 : i32
    %0 = arith.cmpi eq, %arg1, %c0_i32 : i32
    %1 = arith.extui %0 : i1 to i32
    %c0_i32_0 = arith.constant 0 : i32
    %2 = arith.cmpi ne, %1, %c0_i32_0 : i32
    scf.if %2 {
      %cst_34 = arith.constant 0.000000e+00 : f32
      %61 = vector.broadcast %cst_34 : f32 to vector<16x16xf32>
      %c0_35 = arith.constant 0 : index
      %c0_36 = arith.constant 0 : index
      %62 = vector.load %arg7[%c0_35, %c0_36] : memref<16x16xf32, #tpu.memory_space<vmem>>, vector<16x16xf32>
      tpu.vector_store %arg7[%c0_35, %c0_36], %61 {strides = array<i32>} : memref<16x16xf32, #tpu.memory_space<vmem>>, vector<16x16xf32>,
      %cst_37 = arith.constant 0.000000e+00 : f32
      %63 = vector.broadcast %cst_37 : f32 to vector<16x2xf32>
      %c0_38 = arith.constant 0 : index
      %c0_39 = arith.constant 0 : index
      %64 = vector.load %arg8[%c0_38, %c0_39] : memref<16x2xf32, #tpu.memory_space<vmem>>, vector<16x2xf32>
      tpu.vector_store %arg8[%c0_38, %c0_39], %63 {strides = array<i32>} : memref<16x2xf32, #tpu.memory_space<vmem>>, vector<16x2xf32>,
      %cst_40 = arith.constant -1.000000e+30 : f32
      %65 = vector.broadcast %cst_40 : f32 to vector<16x2xf32>
      %c0_41 = arith.constant 0 : index
      %c0_42 = arith.constant 0 : index
      %66 = vector.load %arg9[%c0_41, %c0_42] : memref<16x2xf32, #tpu.memory_space<vmem>>, vector<16x2xf32>
      tpu.vector_store %arg9[%c0_41, %c0_42], %65 {strides = array<i32>} : memref<16x2xf32, #tpu.memory_space<vmem>>, vector<16x2xf32>,
    } else {
    }
    %c0 = arith.constant 0 : index
    %c0_1 = arith.constant 0 : index
    %3 = vector.load %arg3[%c0, %c0_1] : memref<16x128xbf16, #tpu.memory_space<vmem>>, vector<16x128xbf16>
    %4 = arith.extf %3 : vector<16x128xbf16> to vector<16x128xf32>
    %cst = arith.constant 0.000000e+00 : f32
    %5 = vector.broadcast %cst : f32 to vector<16x128xf32>
    %6 = arith.cmpf one, %4, %5 : vector<16x128xf32>
    %c0_2 = arith.constant 0 : index
    %c0_3 = arith.constant 0 : index
    %7 = vector.load %arg2[%c0_2, %c0_3] : memref<16x2xf32, #tpu.memory_space<vmem>>, vector<16x2xf32>
    %c0_4 = arith.constant 0 : index
    %c0_5 = arith.constant 0 : index
    %8 = vector.load %arg5[%c0_4, %c0_5] : memref<2x128xf32, #tpu.memory_space<vmem>>, vector<2x128xf32>
    %c0_6 = arith.constant 0 : index
    %c0_7 = arith.constant 0 : index
    %9 = vector.load %arg4[%c0_6, %c0_7] : memref<128x16xf32, #tpu.memory_space<vmem>>, vector<128x16xf32>
    %10 = vector.extract_strided_slice %7 {offsets = [0, 0], sizes = [16, 1], strides = [1, 1]} : vector<16x2xf32> to vector<16x1xf32>
    %11 = vector.extract_strided_slice %8 {offsets = [0, 0], sizes = [1, 128], strides = [1, 1]} : vector<2x128xf32> to vector<1x128xf32>
    %12 = vector.broadcast %10 : vector<16x1xf32> to vector<16x128xf32>
    %13 = vector.broadcast %11 : vector<1x128xf32> to vector<16x128xf32>
    %14 = arith.addf %12, %13 : vector<16x128xf32>
    %15 = arith.mulf %4, %14 : vector<16x128xf32>
    %cst_8 = arith.constant 5.000000e-01 : f32
    %16 = vector.broadcast %cst_8 : f32 to vector<16x128xf32>
    %17 = arith.mulf %16, %15 : vector<16x128xf32>
    %18 = math.tanh %17 : vector<16x128xf32>
    %cst_9 = arith.constant 5.000000e-01 : f32
    %19 = vector.broadcast %cst_9 : f32 to vector<16x128xf32>
    %20 = arith.mulf %19, %18 : vector<16x128xf32>
    %21 = math.exp %20 : vector<16x128xf32>
    %cst_10 = arith.constant 0.000000e+00 : f32
    %22 = vector.broadcast %cst_10 : f32 to vector<16x128xf32>
    %23 = arith.select %6, %21, %22 : vector<16x128xi1>, vector<16x128xf32>
    %c0_11 = arith.constant 0 : index
    %c0_12 = arith.constant 0 : index
    %24 = vector.load %arg8[%c0_11, %c0_12] : memref<16x2xf32, #tpu.memory_space<vmem>>, vector<16x1xf32>
    %cst_13 = arith.constant dense<0.000000e+00> : vector<16xf32>
    %25 = vector.multi_reduction <add>, %23, %cst_13 [1] : vector<16x128xf32> to vector<16xf32>
    %26 = vector.shape_cast %25 : vector<16xf32> to vector<16x1xf32>
    %27 = arith.addf %24, %26 : vector<16x1xf32>
    %c0_14 = arith.constant 0 : index
    %c0_15 = arith.constant 0 : index
    %28 = vector.load %arg8[%c0_14, %c0_15] : memref<16x2xf32, #tpu.memory_space<vmem>>, vector<16x1xf32>
    tpu.vector_store %arg8[%c0_14, %c0_15], %27 {strides = array<i32>} : memref<16x2xf32, #tpu.memory_space<vmem>>, vector<16x1xf32>,
    %c0_16 = arith.constant 0 : index
    %c0_17 = arith.constant 0 : index
    %29 = vector.load %arg7[%c0_16, %c0_17] : memref<16x16xf32, #tpu.memory_space<vmem>>, vector<16x8xf32>
    %30 = vector.extract_strided_slice %9 {offsets = [0, 0], sizes = [128, 8], strides = [1, 1]} : vector<128x16xf32> to vector<128x8xf32>
    %cst_18 = arith.constant dense<0.000000e+00> : vector<16x8xf32>
    %31 = tpu.matmul %23, %30, %cst_18 {dimension_numbers = #tpu.dot_dimension_numbers<[1], [0], [0], [1], [0, 0, 1, 1], [], []>} : vector<16x128xf32>, vector<128x8xf32>, vector<16x8xf32> -> vector<16x8xf32>
    %32 = arith.addf %29, %31 : vector<16x8xf32>
    %c0_19 = arith.constant 0 : index
    %c0_20 = arith.constant 0 : index
    %33 = vector.load %arg7[%c0_19, %c0_20] : memref<16x16xf32, #tpu.memory_space<vmem>>, vector<16x8xf32>
    tpu.vector_store %arg7[%c0_19, %c0_20], %32 {strides = array<i32>} : memref<16x16xf32, #tpu.memory_space<vmem>>, vector<16x8xf32>,
    %34 = vector.extract_strided_slice %7 {offsets = [0, 1], sizes = [16, 1], strides = [1, 1]} : vector<16x2xf32> to vector<16x1xf32>
    %35 = vector.extract_strided_slice %8 {offsets = [1, 0], sizes = [1, 128], strides = [1, 1]} : vector<2x128xf32> to vector<1x128xf32>
    %36 = vector.broadcast %34 : vector<16x1xf32> to vector<16x128xf32>
    %37 = vector.broadcast %35 : vector<1x128xf32> to vector<16x128xf32>
    %38 = arith.addf %36, %37 : vector<16x128xf32>
    %39 = arith.mulf %4, %38 : vector<16x128xf32>
    %cst_21 = arith.constant 5.000000e-01 : f32
    %40 = vector.broadcast %cst_21 : f32 to vector<16x128xf32>
    %41 = arith.mulf %40, %39 : vector<16x128xf32>
    %42 = math.tanh %41 : vector<16x128xf32>
    %cst_22 = arith.constant 5.000000e-01 : f32
    %43 = vector.broadcast %cst_22 : f32 to vector<16x128xf32>
    %44 = arith.mulf %43, %42 : vector<16x128xf32>
    %45 = math.exp %44 : vector<16x128xf32>
    %cst_23 = arith.constant 0.000000e+00 : f32
    %46 = vector.broadcast %cst_23 : f32 to vector<16x128xf32>
    %47 = arith.select %6, %45, %46 : vector<16x128xi1>, vector<16x128xf32>
    %c0_24 = arith.constant 0 : index
    %c1 = arith.constant 1 : index
    %48 = vector.load %arg8[%c0_24, %c1] : memref<16x2xf32, #tpu.memory_space<vmem>>, vector<16x1xf32>
    %cst_25 = arith.constant dense<0.000000e+00> : vector<16xf32>
    %49 = vector.multi_reduction <add>, %47, %cst_25 [1] : vector<16x128xf32> to vector<16xf32>
    %50 = vector.shape_cast %49 : vector<16xf32> to vector<16x1xf32>
    %51 = arith.addf %48, %50 : vector<16x1xf32>
    %c0_26 = arith.constant 0 : index
    %c1_27 = arith.constant 1 : index
    %52 = vector.load %arg8[%c0_26, %c1_27] : memref<16x2xf32, #tpu.memory_space<vmem>>, vector<16x1xf32>
    tpu.vector_store %arg8[%c0_26, %c1_27], %51 {strides = array<i32>} : memref<16x2xf32, #tpu.memory_space<vmem>>, vector<16x1xf32>,
    %c0_28 = arith.constant 0 : index
    %c8 = arith.constant 8 : index
    %53 = vector.load %arg7[%c0_28, %c8] : memref<16x16xf32, #tpu.memory_space<vmem>>, vector<16x8xf32>
    %54 = vector.extract_strided_slice %9 {offsets = [0, 8], sizes = [128, 8], strides = [1, 1]} : vector<128x16xf32> to vector<128x8xf32>
    %cst_29 = arith.constant dense<0.000000e+00> : vector<16x8xf32>
    %55 = tpu.matmul %47, %54, %cst_29 {dimension_numbers = #tpu.dot_dimension_numbers<[1], [0], [0], [1], [0, 0, 1, 1], [], []>} : vector<16x128xf32>, vector<128x8xf32>, vector<16x8xf32> -> vector<16x8xf32>
    %56 = arith.addf %53, %55 : vector<16x8xf32>
    %c0_30 = arith.constant 0 : index
    %c8_31 = arith.constant 8 : index
    %57 = vector.load %arg7[%c0_30, %c8_31] : memref<16x16xf32, #tpu.memory_space<vmem>>, vector<16x8xf32>
    tpu.vector_store %arg7[%c0_30, %c8_31], %56 {strides = array<i32>} : memref<16x16xf32, #tpu.memory_space<vmem>>, vector<16x8xf32>,
    %c0_i32_32 = arith.constant 0 : i32
    %58 = arith.cmpi eq, %arg1, %c0_i32_32 : i32
    %59 = arith.extui %58 : i1 to i32
    %c0_i32_33 = arith.constant 0 : i32
    %60 = arith.cmpi ne, %59, %c0_i32_33 : i32
    scf.if %60 {
      %c0_34 = arith.constant 0 : index
      %c0_35 = arith.constant 0 : index
      %61 = vector.load %arg8[%c0_34, %c0_35] : memref<16x2xf32, #tpu.memory_space<vmem>>, vector<16x1xf32>
      %cst_36 = arith.constant 0.000000e+00 : f32
      %62 = vector.broadcast %cst_36 : f32 to vector<16x1xf32>
      %63 = arith.cmpf ogt, %61, %62 : vector<16x1xf32>
      %cst_37 = arith.constant 1.000000e+00 : f32
      %64 = vector.broadcast %cst_37 : f32 to vector<16x1xf32>
      %65 = arith.select %63, %61, %64 : vector<16x1xi1>, vector<16x1xf32>
      %cst_38 = arith.constant 0.000000e+00 : f32
      %66 = vector.broadcast %cst_38 : f32 to vector<16x1xf32>
      %67 = arith.cmpf ogt, %61, %66 : vector<16x1xf32>
      %c0_39 = arith.constant 0 : index
      %c0_40 = arith.constant 0 : index
      %68 = vector.load %arg7[%c0_39, %c0_40] : memref<16x16xf32, #tpu.memory_space<vmem>>, vector<16x8xf32>
      %69 = vector.broadcast %65 : vector<16x1xf32> to vector<16x8xf32>
      %70 = arith.divf %68, %69 : vector<16x8xf32>
      %cst_41 = arith.constant 0.000000e+00 : f32
      %71 = vector.shape_cast %67 : vector<16x1xi1> to vector<16x1xi1>
      %72 = vector.broadcast %71 : vector<16x1xi1> to vector<16x8xi1>
      %73 = vector.broadcast %cst_41 : f32 to vector<16x8xf32>
      %74 = arith.select %72, %70, %73 : vector<16x8xi1>, vector<16x8xf32>
      %c0_42 = arith.constant 0 : index
      %c0_43 = arith.constant 0 : index
      %75 = vector.load %arg6[%c0_42, %c0_43] : memref<16x16xf32, #tpu.memory_space<vmem>>, vector<16x8xf32>
      tpu.vector_store %arg6[%c0_42, %c0_43], %74 {strides = array<i32>} : memref<16x16xf32, #tpu.memory_space<vmem>>, vector<16x8xf32>,
      %c0_44 = arith.constant 0 : index
      %c1_45 = arith.constant 1 : index
      %76 = vector.load %arg8[%c0_44, %c1_45] : memref<16x2xf32, #tpu.memory_space<vmem>>, vector<16x1xf32>
      %cst_46 = arith.constant 0.000000e+00 : f32
      %77 = vector.broadcast %cst_46 : f32 to vector<16x1xf32>
      %78 = arith.cmpf ogt, %76, %77 : vector<16x1xf32>
      %cst_47 = arith.constant 1.000000e+00 : f32
      %79 = vector.broadcast %cst_47 : f32 to vector<16x1xf32>
      %80 = arith.select %78, %76, %79 : vector<16x1xi1>, vector<16x1xf32>
      %cst_48 = arith.constant 0.000000e+00 : f32
      %81 = vector.broadcast %cst_48 : f32 to vector<16x1xf32>
      %82 = arith.cmpf ogt, %76, %81 : vector<16x1xf32>
      %c0_49 = arith.constant 0 : index
      %c8_50 = arith.constant 8 : index
      %83 = vector.load %arg7[%c0_49, %c8_50] : memref<16x16xf32, #tpu.memory_space<vmem>>, vector<16x8xf32>
      %84 = vector.broadcast %80 : vector<16x1xf32> to vector<16x8xf32>
      %85 = arith.divf %83, %84 : vector<16x8xf32>
      %cst_51 = arith.constant 0.000000e+00 : f32
      %86 = vector.shape_cast %82 : vector<16x1xi1> to vector<16x1xi1>
      %87 = vector.broadcast %86 : vector<16x1xi1> to vector<16x8xi1>
      %88 = vector.broadcast %cst_51 : f32 to vector<16x8xf32>
      %89 = arith.select %87, %85, %88 : vector<16x8xi1>, vector<16x8xf32>
      %c0_52 = arith.constant 0 : index
      %c8_53 = arith.constant 8 : index
      %90 = vector.load %arg6[%c0_52, %c8_53] : memref<16x16xf32, #tpu.memory_space<vmem>>, vector<16x8xf32>
      tpu.vector_store %arg6[%c0_52, %c8_53], %89 {strides = array<i32>} : memref<16x16xf32, #tpu.memory_space<vmem>>, vector<16x8xf32>,
    } else {
    }
    return
  }
  func.func @transform_0(%arg0: i32, %arg1: i32) -> (i32, i32) {
    %c0_i32 = arith.constant 0 : i32
    %c0_i32_0 = arith.constant 0 : i32
    return %arg0, %c0_i32 : i32, i32
  }
  func.func @transform_1(%arg0: i32, %arg1: i32) -> (i32, i32) {
    %c0_i32 = arith.constant 0 : i32
    return %arg0, %arg1 : i32, i32
  }
  func.func @transform_2(%arg0: i32, %arg1: i32) -> (i32, i32) {
    %c0_i32 = arith.constant 0 : i32
    %c0_i32_0 = arith.constant 0 : i32
    return %arg1, %c0_i32 : i32, i32
  }
  func.func @transform_3(%arg0: i32, %arg1: i32) -> (i32, i32) {
    %c0_i32 = arith.constant 0 : i32
    %c0_i32_0 = arith.constant 0 : i32
    return %c0_i32, %arg1 : i32, i32
  }
  func.func @transform_4(%arg0: i32, %arg1: i32) -> (i32, i32) {
    %c0_i32 = arith.constant 0 : i32
    %c0_i32_0 = arith.constant 0 : i32
    return %arg0, %c0_i32 : i32, i32
  }
}

</mosaic_0001>

<llo_original>
// kernel: tpu_custom_call.1
$region0: #{tpu_custom_call.1}
  #allocation0 [shape = 'u32[]', space=smem, size = 0x4, offset = 0x4, fixed_abs, tag = 'smem constant byte address 0x4 - core index']
  #allocation1 [shape = 'u32[144,128]{1,0:T(1,128)}', space=vmem, size = 0x12000, scoped, tag = 'internal scratch']
  #allocation2 [shape = 'f32[16,16]{1,0:T(8,128)}', space=vmem, size = 0x2000, scoped, tag = 'scratch operand']
  #allocation3 [shape = 'f32[16,2]{1,0:T(8,128)}', space=vmem, size = 0x2000, scoped, tag = 'scratch operand']
  #allocation4 [shape = 'f32[16,2]{1,0:T(8,128)}', space=vmem, size = 0x2000, scoped, tag = 'scratch operand']
  %s0 = inlined_call_operand.vmem [shape: f32[16,2], index: 0, kind: input, shape index: {}]
  %s1 = inlined_call_operand.vmem [shape: bf16[16,128], index: 1, kind: input, shape index: {}]
  %s2 = inlined_call_operand.vmem [shape: f32[128,16], index: 2, kind: input, shape index: {}]
  %s3 = inlined_call_operand.vmem [shape: f32[2,128], index: 3, kind: input, shape index: {}]
  %s4 = inlined_call_operand.hbm [shape: f32[16,16], index: 4, kind: output, shape index: {}]
  %s5 = sld [smem:[#allocation0]]
  $region34: #{tpu_custom_call.1} parent=0
    _
  %s7 = ssub.s32 1, %s5
  %s8 = scalar_select 0, %s7, %s5
  $region1: #{tpu_custom_call.1} parent=0
    #allocation5 [shape = 'u8[8192]{0}', space=vmem, size = 0x2000, scoped, tag = 'output window, operand 0, single buffered']
    #allocation6 [shape = 's32[1]{0}', space=sflag, size = 0x4, scoped, tag = 'scoped memory for tpu_custom_call.1']
    %9 = vsyncpa [#allocation6], 0
    // Predicated region
    $region2: #{tpu_custom_call.1} parent=1 // pred_check
      _
    $region3: #{tpu_custom_call.1} parent=1 // pred_check_branch
      %11 = sbr.rel (0) target = $region5
    $region4: #{tpu_custom_call.1} parent=1 // pred_region
      _
    $region5: #{tpu_custom_call.1} parent=1 // pred_fallthru
      _
    // Predicated region
    $region6: #{tpu_custom_call.1} parent=1 // pred_check
      _
    $region7: #{tpu_custom_call.1} parent=1 // pred_check_branch
      %13 = sbr.rel (0) target = $region9
    $region8: #{tpu_custom_call.1} parent=1 // pred_region
      _
    $region9: #{tpu_custom_call.1} parent=1 // pred_fallthru
      _
    // Predicated region
    $region10: #{tpu_custom_call.1} parent=1 // pred_check
      _
    $region11: #{tpu_custom_call.1} parent=1 // pred_check_branch
      %15 = sbr.rel (0) target = $region13
    $region12: #{tpu_custom_call.1} parent=1 // pred_region
      _
    $region13: #{tpu_custom_call.1} parent=1 // pred_fallthru
      _
    // Predicated region
    $region14: #{tpu_custom_call.1} parent=1 // pred_check
      _
    $region15: #{tpu_custom_call.1} parent=1 // pred_check_branch
      %17 = sbr.rel (0) target = $region17
    $region16: #{tpu_custom_call.1} parent=1 // pred_region
      _
    $region17: #{tpu_custom_call.1} parent=1 // pred_fallthru
      _
    %p18 = scmp.eq.s32.totalorder 0, 0
    // Predicated region
    $region18: #{tpu_custom_call.1} parent=1 // pred_check
      %p19 = pneg %p18
    $region19: #{tpu_custom_call.1} parent=1 // pred_check_branch
      %21 = sbr.rel (%p19) target = $region21
    $region20: #{tpu_custom_call.1} parent=1 // pred_region
      %vm22 = vcmask 130048
      %23 = vst.msk [vmem:[#allocation2] sm:$0xff] %vm22, 0.0
      %24 = vst.msk [vmem:[#allocation2 + $0x8] sm:$0xff] %vm22, 0.0
      %vm25 = vcmask 15360
      %26 = vst.msk [vmem:[#allocation3] sm:$0xff] %vm25, 0.0
      %27 = vst.msk [vmem:[#allocation3 + $0x8] sm:$0xff] %vm25, 0.0
      %28 = vst.msk [vmem:[#allocation4] sm:$0xff] %vm25, -1e+30
      %29 = vst.msk [vmem:[#allocation4 + $0x8] sm:$0xff] %vm25, -1e+30
    $region21: #{tpu_custom_call.1} parent=1 // pred_fallthru
      _
    %v30 = vld [vmem:[%s1] sm:$0xf]
    %v31 = vld [vmem:[%s1 + $0x4] sm:$0xf]
    %v32 = vunpack.c.l.bf16 %v30
    %v33 = vunpack.c.l.bf16 %v31
    %vm34 = vcmp.ne.f32.partialorder %v32, 0.0
    %vm35 = vcmp.ne.f32.partialorder %v33, 0.0
    %v36 = vld [vmem:[%s0] sm:$0xff]
    %v37 = vld [vmem:[%s0 + $0x8] sm:$0xff]
    %v38 = vld [vmem:[%s3] sm:$0x3]
    %v39 = vld [vmem:[%s2] sm:$0xff]
    %v40 = vld [vmem:[%s2 + $0x8] sm:$0xff]
    %v41 = vld [vmem:[%s2 + $0x10] sm:$0xff]
    %v42 = vld [vmem:[%s2 + $0x18] sm:$0xff]
    %v43 = vld [vmem:[%s2 + $0x20] sm:$0xff]
    %v44 = vld [vmem:[%s2 + $0x28] sm:$0xff]
    %v45 = vld [vmem:[%s2 + $0x30] sm:$0xff]
    %v46 = vld [vmem:[%s2 + $0x38] sm:$0xff]
    %v47 = vld [vmem:[%s2 + $0x40] sm:$0xff]
    %v48 = vld [vmem:[%s2 + $0x48] sm:$0xff]
    %v49 = vld [vmem:[%s2 + $0x50] sm:$0xff]
    %v50 = vld [vmem:[%s2 + $0x58] sm:$0xff]
    %v51 = vld [vmem:[%s2 + $0x60] sm:$0xff]
    %v52 = vld [vmem:[%s2 + $0x68] sm:$0xff]
    %v53 = vld [vmem:[%s2 + $0x70] sm:$0xff]
    %v54 = vld [vmem:[%s2 + $0x78] sm:$0xff]
    %56 = vset.pattern.permute.xlu0 0
    %57 = vperm.xlu0 %56, %v36
    %v58 = vpop.permute.xlu0 %57
    %61 = vset.pattern.permute.xlu0 0
    %62 = vperm.xlu0 %61, %v37
    %v63 = vpop.permute.xlu0 %62
    %v65 = vlaneseq
    %v66 = vshrl.u32 %v65, 7
    %v67 = vsub.s32 0, %v66
    %v68 = vrot.slane %v38, %v67
    %v69 = vadd.f32 %v58, %v68
    %v70 = vadd.f32 %v63, %v68
    %v71 = vmul.f32 %v32, %v69
    %v72 = vmul.f32 %v33, %v70
    %v73 = vmul.f32 %v71, 0.5
    %v74 = vmul.f32 %v72, 0.5
    %v75 = vtanh.pop %v73
    %v76 = vtanh.pop %v74
    %v77 = vmul.f32 %v75, 0.5
    %v78 = vmul.f32 %v76, 0.5
    %v79 = vmul.f32 %v77, 1.442695
    %v80 = vpow.pop %v79
    %v81 = vmul.f32 %v78, 1.442695
    %v82 = vpow.pop %v81
    %v83 = vsel %vm34, %v80, 0.0
    %v84 = vsel %vm35, %v82, 0.0
    %v85 = vld [vmem:[#allocation3] sm:$0xff]
    %v86 = vld [vmem:[#allocation3 + $0x8] sm:$0xff]
    %87 = vadd.xlane.f32.xlu0 %v83
    %v88 = vpop.xlane.xlu0 %87
    %89 = vadd.xlane.f32.xlu0 %v84
    %v90 = vpop.xlane.xlu0 %89
    %v91 = vadd.f32 %v85, %v88
    %v92 = vadd.f32 %v86, %v90
    %vm93 = vcmask 7168
    %94 = vst.msk [vmem:[#allocation3] sm:$0xff] %vm93, %v91
    %95 = vst.msk [vmem:[#allocation3 + $0x8] sm:$0xff] %vm93, %v92
    %v96 = vld [vmem:[#allocation2] sm:$0xff]
    %v97 = vld [vmem:[#allocation2 + $0x8] sm:$0xff]
    %98 = vmatprep.subr.mxu0 0.0
    %99 = vmatpush1.msra.mxu0 %v39
    %100 = vmatprep.subr.mxu0 0.0
    %101 = vmatpush1.msra.mxu0 %v40
    %102 = vmatprep.subr.mxu0 0.0
    %103 = vmatpush1.msra.mxu0 %v41
    %104 = vmatprep.subr.mxu0 0.0
    %105 = vmatpush1.msra.mxu0 %v42
    %106 = vmatprep.subr.mxu0 0.0
    %107 = vmatpush1.msra.mxu0 %v43
    %108 = vmatprep.subr.mxu0 0.0
    %109 = vmatpush1.msra.mxu0 %v44
    %110 = vmatprep.subr.mxu0 0.0
    %111 = vmatpush1.msra.mxu0 %v45
    %112 = vmatprep.subr.mxu0 0.0
    %113 = vmatpush1.msra.mxu0 %v46
    %114 = vmatprep.subr.mxu0 0.0
    %115 = vmatpush1.msra.mxu0 %v47
    %116 = vmatprep.subr.mxu0 0.0
    %117 = vmatpush1.msra.mxu0 %v48
    %118 = vmatprep.subr.mxu0 0.0
    %119 = vmatpush1.msra.mxu0 %v49
    %120 = vmatprep.subr.mxu0 0.0
    %121 = vmatpush1.msra.mxu0 %v50
    %122 = vmatprep.subr.mxu0 0.0
    %123 = vmatpush1.msra.mxu0 %v51
    %124 = vmatprep.subr.mxu0 0.0
    %125 = vmatpush1.msra.mxu0 %v52
    %126 = vmatprep.subr.mxu0 0.0
    %127 = vmatpush1.msra.mxu0 %v53
    %128 = vmatprep.subr.mxu0 0.0
    %129 = vmatpush1.msra.mxu0 %v54
    %130 = vmatprep.subr.mxu0 0.0
    %131 = vmatpush1.msra.mxu0 0.0
    %132 = vmatprep.subr.mxu0 0.0
    %133 = vmatpush1.msra.mxu0 0.0
    %134 = vmatprep.subr.mxu0 0.0
    %135 = vmatpush1.msra.mxu0 0.0
    %136 = vmatprep.subr.mxu0 0.0
    %137 = vmatpush1.msra.mxu0 0.0
    %138 = vmatprep.subr.mxu0 0.0
    %139 = vmatpush1.msra.mxu0 0.0
    %140 = vmatprep.subr.mxu0 0.0
    %141 = vmatpush1.msra.mxu0 0.0
    %142 = vmatprep.subr.mxu0 0.0
    %143 = vmatpush1.msra.mxu0 0.0
    %144 = vmatprep.subr.mxu0 0.0
    %145 = vmatpush1.msra.mxu0 0.0
    %146 = vmatprep.subr.mxu0 0.0
    %147 = vmatpush1.msra.mxu0 0.0
    %148 = vmatprep.subr.mxu0 0.0
    %149 = vmatpush1.msra.mxu0 0.0
    %150 = vmatprep.subr.mxu0 0.0
    %151 = vmatpush1.msra.mxu0 0.0
    %152 = vmatprep.subr.mxu0 0.0
    %153 = vmatpush1.msra.mxu0 0.0
    %154 = vmatprep.subr.mxu0 0.0
    %155 = vmatpush1.msra.mxu0 0.0
    %156 = vmatprep.subr.mxu0 0.0
    %157 = vmatpush1.msra.mxu0 0.0
    %158 = vmatprep.subr.mxu0 0.0
    %159 = vmatpush1.msra.mxu0 0.0
    %160 = vmatprep.subr.mxu0 0.0
    %161 = vmatpush1.msra.mxu0 0.0
    %162 = vmatprep.mubr.f32.mxu0 0.0
    %163 = vmatmul.mubr.f32.gmra.mrb[0].mxu0 %v83
    %v164 = vpop.f32.mrb[0].mxu0
    %v165 = vadd.f32 0.0, %v164
    %v166 = vpop.f32.mrb[0].mxu0
    %167 = vmatprep.mubr.f32.mxu0 0.0
    %168 = vmatmul.mubr.f32.gmra.mrb[0].mxu0 %v84
    %v169 = vpop.f32.mrb[0].mxu0
    %v170 = vadd.f32 0.0, %v169
    %v171 = vpop.f32.mrb[0].mxu0
    %172 = vdwg.mxu0
    %v173 = vadd.f32 %v96, %v165
    %v174 = vadd.f32 %v97, %v170
    %vm175 = vcmask 64512
    %176 = vst.msk [vmem:[#allocation2] sm:$0xff] %vm175, %v173
    %177 = vst.msk [vmem:[#allocation2 + $0x8] sm:$0xff] %vm175, %v174
    %178 = vset.pattern.permute.xlu0 1
    %179 = vperm.xlu0 %178, %v36
    %v180 = vpop.permute.xlu0 %179
    %182 = vset.pattern.permute.xlu0 1
    %183 = vperm.xlu0 %182, %v37
    %v184 = vpop.permute.xlu0 %183
    %v186 = vlaneseq
    %v187 = vshrl.u32 %v186, 7
    %v188 = vsub.s32 1, %v187
    %v189 = vrot.slane %v38, %v188
    %v190 = vadd.f32 %v180, %v189
    %v191 = vadd.f32 %v184, %v189
    %v192 = vmul.f32 %v32, %v190
    %v193 = vmul.f32 %v33, %v191
    %v194 = vmul.f32 %v192, 0.5
    %v195 = vmul.f32 %v193, 0.5
    %v196 = vtanh.pop %v194
    %v197 = vtanh.pop %v195
    %v198 = vmul.f32 %v196, 0.5
    %v199 = vmul.f32 %v197, 0.5
    %v200 = vmul.f32 %v198, 1.442695
    %v201 = vpow.pop %v200
    %v202 = vmul.f32 %v199, 1.442695
    %v203 = vpow.pop %v202
    %v204 = vsel %vm34, %v201, 0.0
    %v205 = vsel %vm35, %v203, 0.0
    %v206 = vld [vmem:[#allocation3] sm:$0xff]
    %v207 = vld [vmem:[#allocation3 + $0x8] sm:$0xff]
    %208 = vadd.xlane.f32.xlu0 %v204
    %v209 = vpop.xlane.xlu0 %208
    %210 = vadd.xlane.f32.xlu0 %v205
    %v211 = vpop.xlane.xlu0 %210
    %v212 = vadd.f32 %v206, %v209
    %v213 = vadd.f32 %v207, %v211
    %vm214 = vcmask 15368
    %215 = vst.msk [vmem:[#allocation3] sm:$0xff] %vm214, %v212
    %216 = vst.msk [vmem:[#allocation3 + $0x8] sm:$0xff] %vm214, %v213
    %v217 = vld [vmem:[#allocation2] sm:$0xff]
    %v218 = vld [vmem:[#allocation2 + $0x8] sm:$0xff]
    %235 = vrot.lane.b32.xlu0 %v39, 120
    %v236 = vpop.permute.xlu0 %235
    %237 = vrot.lane.b32.xlu0 %v40, 120
    %v238 = vpop.permute.xlu0 %237
    %239 = vrot.lane.b32.xlu0 %v41, 120
    %v240 = vpop.permute.xlu0 %239
    %241 = vrot.lane.b32.xlu0 %v42, 120
    %v242 = vpop.permute.xlu0 %241
    %243 = vrot.lane.b32.xlu0 %v43, 120
    %v244 = vpop.permute.xlu0 %243
    %245 = vrot.lane.b32.xlu0 %v44, 120
    %v246 = vpop.permute.xlu0 %245
    %247 = vrot.lane.b32.xlu0 %v45, 120
    %v248 = vpop.permute.xlu0 %247
    %249 = vrot.lane.b32.xlu0 %v46, 120
    %v250 = vpop.permute.xlu0 %249
    %251 = vrot.lane.b32.xlu0 %v47, 120
    %v252 = vpop.permute.xlu0 %251
    %253 = vrot.lane.b32.xlu0 %v48, 120
    %v254 = vpop.permute.xlu0 %253
    %255 = vrot.lane.b32.xlu0 %v49, 120
    %v256 = vpop.permute.xlu0 %255
    %257 = vrot.lane.b32.xlu0 %v50, 120
    %v258 = vpop.permute.xlu0 %257
    %259 = vrot.lane.b32.xlu0 %v51, 120
    %v260 = vpop.permute.xlu0 %259
    %261 = vrot.lane.b32.xlu0 %v52, 120
    %v262 = vpop.permute.xlu0 %261
    %263 = vrot.lane.b32.xlu0 %v53, 120
    %v264 = vpop.permute.xlu0 %263
    %265 = vrot.lane.b32.xlu0 %v54, 120
    %v266 = vpop.permute.xlu0 %265
    %283 = vmatprep.subr.mxu0 0.0
    %284 = vmatpush1.msra.mxu0 %v236
    %285 = vmatprep.subr.mxu0 0.0
    %286 = vmatpush1.msra.mxu0 %v238
    %287 = vmatprep.subr.mxu0 0.0
    %288 = vmatpush1.msra.mxu0 %v240
    %289 = vmatprep.subr.mxu0 0.0
    %290 = vmatpush1.msra.mxu0 %v242
    %291 = vmatprep.subr.mxu0 0.0
    %292 = vmatpush1.msra.mxu0 %v244
    %293 = vmatprep.subr.mxu0 0.0
    %294 = vmatpush1.msra.mxu0 %v246
    %295 = vmatprep.subr.mxu0 0.0
    %296 = vmatpush1.msra.mxu0 %v248
    %297 = vmatprep.subr.mxu0 0.0
    %298 = vmatpush1.msra.mxu0 %v250
    %299 = vmatprep.subr.mxu0 0.0
    %300 = vmatpush1.msra.mxu0 %v252
    %301 = vmatprep.subr.mxu0 0.0
    %302 = vmatpush1.msra.mxu0 %v254
    %303 = vmatprep.subr.mxu0 0.0
    %304 = vmatpush1.msra.mxu0 %v256
    %305 = vmatprep.subr.mxu0 0.0
    %306 = vmatpush1.msra.mxu0 %v258
    %307 = vmatprep.subr.mxu0 0.0
    %308 = vmatpush1.msra.mxu0 %v260
    %309 = vmatprep.subr.mxu0 0.0
    %310 = vmatpush1.msra.mxu0 %v262
    %311 = vmatprep.subr.mxu0 0.0
    %312 = vmatpush1.msra.mxu0 %v264
    %313 = vmatprep.subr.mxu0 0.0
    %314 = vmatpush1.msra.mxu0 %v266
    %315 = vmatprep.subr.mxu0 0.0
    %316 = vmatpush1.msra.mxu0 0.0
    %317 = vmatprep.subr.mxu0 0.0
    %318 = vmatpush1.msra.mxu0 0.0
    %319 = vmatprep.subr.mxu0 0.0
    %320 = vmatpush1.msra.mxu0 0.0
    %321 = vmatprep.subr.mxu0 0.0
    %322 = vmatpush1.msra.mxu0 0.0
    %323 = vmatprep.subr.mxu0 0.0
    %324 = vmatpush1.msra.mxu0 0.0
    %325 = vmatprep.subr.mxu0 0.0
    %326 = vmatpush1.msra.mxu0 0.0
    %327 = vmatprep.subr.mxu0 0.0
    %328 = vmatpush1.msra.mxu0 0.0
    %329 = vmatprep.subr.mxu0 0.0
    %330 = vmatpush1.msra.mxu0 0.0
    %331 = vmatprep.subr.mxu0 0.0
    %332 = vmatpush1.msra.mxu0 0.0
    %333 = vmatprep.subr.mxu0 0.0
    %334 = vmatpush1.msra.mxu0 0.0
    %335 = vmatprep.subr.mxu0 0.0
    %336 = vmatpush1.msra.mxu0 0.0
    %337 = vmatprep.subr.mxu0 0.0
    %338 = vmatpush1.msra.mxu0 0.0
    %339 = vmatprep.subr.mxu0 0.0
    %340 = vmatpush1.msra.mxu0 0.0
    %341 = vmatprep.subr.mxu0 0.0
    %342 = vmatpush1.msra.mxu0 0.0
    %343 = vmatprep.subr.mxu0 0.0
    %344 = vmatpush1.msra.mxu0 0.0
    %345 = vmatprep.subr.mxu0 0.0
    %346 = vmatpush1.msra.mxu0 0.0
    %347 = vmatprep.mubr.f32.mxu0 0.0
    %348 = vmatmul.mubr.f32.gmra.mrb[0].mxu0 %v204
    %v349 = vpop.f32.mrb[0].mxu0
    %v350 = vadd.f32 0.0, %v349
    %v351 = vpop.f32.mrb[0].mxu0
    %352 = vmatprep.mubr.f32.mxu0 0.0
    %353 = vmatmul.mubr.f32.gmra.mrb[0].mxu0 %v205
    %v354 = vpop.f32.mrb[0].mxu0
    %v355 = vadd.f32 0.0, %v354
    %v356 = vpop.f32.mrb[0].mxu0
    %357 = vdwg.mxu0
    %360 = vrot.lane.b32.xlu0 %v350, 8
    %v361 = vpop.permute.xlu0 %360
    %362 = vrot.lane.b32.xlu0 %v355, 8
    %v363 = vpop.permute.xlu0 %362
    %v366 = vadd.f32 %v217, %v361
    %v367 = vadd.f32 %v218, %v363
    %vm368 = vcmask 130112
    %369 = vst.msk [vmem:[#allocation2] sm:$0xff] %vm368, %v366
    %370 = vst.msk [vmem:[#allocation2 + $0x8] sm:$0xff] %vm368, %v367
    // Predicated region
    $region22: #{tpu_custom_call.1} parent=1 // pred_check
      %p371 = pneg %p18
    $region23: #{tpu_custom_call.1} parent=1 // pred_check_branch
      %373 = sbr.rel (%p371) target = $region25
    $region24: #{tpu_custom_call.1} parent=1 // pred_region
      %v374 = vld [vmem:[#allocation3] sm:$0xff]
      %v375 = vld [vmem:[#allocation3 + $0x8] sm:$0xff]
      %vm376 = vcmp.gt.f32.partialorder %v374, 0.0
      %vm377 = vcmp.gt.f32.partialorder %v375, 0.0
      %v378 = vsel %vm376, %v374, 1.0
      %v379 = vsel %vm377, %v375, 1.0
      %v380 = vld [vmem:[#allocation2] sm:$0xff]
      %v381 = vld [vmem:[#allocation2 + $0x8] sm:$0xff]
      %383 = vset.pattern.permute.xlu0 0
      %384 = vperm.xlu0 %383, %v378
      %v385 = vpop.permute.xlu0 %384
      %388 = vset.pattern.permute.xlu0 0
      %389 = vperm.xlu0 %388, %v379
      %v390 = vpop.permute.xlu0 %389
      %v392 = vrcp.pop %v385
      %v393 = vmul.f32 %v380, %v392
      %v394 = vrcp.pop %v390
      %v395 = vmul.f32 %v381, %v394
      %v396 = vsel %vm376, 1, 0
      %v397 = vsel %vm377, 1, 0
      %398 = vset.pattern.permute.xlu0 0
      %399 = vperm.xlu0 %398, %v396
      %v400 = vpop.permute.xlu0 %399
      %401 = vset.pattern.permute.xlu0 0
      %402 = vperm.xlu0 %401, %v397
      %v403 = vpop.permute.xlu0 %402
      %vm404 = vcmp.eq.s32.totalorder %v400, 1
      %vm405 = vcmp.eq.s32.totalorder %v403, 1
      %v406 = vsel %vm404, %v393, 0.0
      %v407 = vsel %vm405, %v395, 0.0
      %408 = vst.msk [vmem:[#allocation5] sm:$0xff] %vm175, %v406
      %409 = vst.msk [vmem:[#allocation5 + $0x8] sm:$0xff] %vm175, %v407
      %v410 = vld [vmem:[#allocation3] sm:$0xff]
      %v411 = vld [vmem:[#allocation3 + $0x8] sm:$0xff]
      %vm412 = vcmp.gt.f32.partialorder %v410, 0.0
      %vm413 = vcmp.gt.f32.partialorder %v411, 0.0
      %v414 = vsel %vm412, %v410, 1.0
      %v415 = vsel %vm413, %v411, 1.0
      %v416 = vld [vmem:[#allocation2] sm:$0xff]
      %v417 = vld [vmem:[#allocation2 + $0x8] sm:$0xff]
      %419 = vset.pattern.permute.xlu0 1
      %420 = vperm.xlu0 %419, %v414
      %v421 = vpop.permute.xlu0 %420
      %424 = vset.pattern.permute.xlu0 1
      %425 = vperm.xlu0 %424, %v415
      %v426 = vpop.permute.xlu0 %425
      %v428 = vrcp.pop %v421
      %v429 = vmul.f32 %v416, %v428
      %v430 = vrcp.pop %v426
      %v431 = vmul.f32 %v417, %v430
      %v432 = vsel %vm412, 1, 0
      %v433 = vsel %vm413, 1, 0
      %434 = vset.pattern.permute.xlu0 1
      %435 = vperm.xlu0 %434, %v432
      %v436 = vpop.permute.xlu0 %435
      %437 = vset.pattern.permute.xlu0 1
      %438 = vperm.xlu0 %437, %v433
      %v439 = vpop.permute.xlu0 %438
      %vm440 = vcmp.eq.s32.totalorder %v436, 1
      %vm441 = vcmp.eq.s32.totalorder %v439, 1
      %v442 = vsel %vm440, %v429, 0.0
      %v443 = vsel %vm441, %v431, 0.0
      %444 = vst.msk [vmem:[#allocation5] sm:$0xff] %vm368, %v442
      %445 = vst.msk [vmem:[#allocation5 + $0x8] sm:$0xff] %vm368, %v443
    $region25: #{tpu_custom_call.1} parent=1 // pred_fallthru
      _
    // Predicated region
    $region26: #{tpu_custom_call.1} parent=1 // pred_check
      _
    $region27: #{tpu_custom_call.1} parent=1 // pred_check_branch
      %447 = sbr.rel (0) target = $region29
    $region28: #{tpu_custom_call.1} parent=1 // pred_region
      %s449 = ssub.s32 256, 256
      %450 = vsyncadd [#allocation6], %s449
      %s451 = sshll.u32 [#allocation5], 4
      %s452 = int_to_ptr.vmem [resolvable:$true] %s451
      %457 = dma.vmem_to_hbm [thread:$0]  %s452, 256, %s4, [#allocation6], 128, 128, 8
    $region29: #{tpu_custom_call.1} parent=1 // pred_fallthru
      _
    // Predicated region
    $region30: #{tpu_custom_call.1} parent=1 // pred_check
      _
    $region31: #{tpu_custom_call.1} parent=1 // pred_check_branch
      %459 = sbr.rel (0) target = $region33
    $region32: #{tpu_custom_call.1} parent=1 // pred_region
      %460 = dma.done [#allocation6], 256
    $region33: #{tpu_custom_call.1} parent=1 // pred_fallthru
      _
    %461 = vsyncpa [#allocation6], 1

</llo_original>
